<compile_context>
chip_gen: v5e
topology: v5e:2x2
jax: 0.10.0
libtpu: 0.0.40
codegen_flags: <defaults>
</compile_context>

<pallas_src>
import jax
import jax.numpy as jnp
from jax.experimental import pallas as pl
from jax.experimental.pallas import tpu as pltpu


def _make_attention3_kernel(S, S_pad, TS):
    """Builds the two-pass kernel. S, S_pad, TS are static Python ints."""

    def kernel(x_ref, w_ref, b_ref, o_ref, logit_ref):
        # x_ref:     (TS, D)    current sequence tile (VMEM, pipelined)
        # w_ref:     (1, D)     Linear(D -> 1) weight, resident in VMEM
        # b_ref:     (1, 1)     Linear bias, SMEM scalar (cancels in softmax)
        # o_ref:     (TS, D)    output tile
        # logit_ref: (S_pad, 1) f32 VMEM scratch: logits, then attention weights
        p = pl.program_id(0)   # pass: 0 = compute logits, 1 = normalize & scale
        i = pl.program_id(1)   # sequence-tile index
        start = pl.multiple_of(i * TS, TS)

        # ---- pass 0: logits for this tile ---------------------------------
        @pl.when(p == 0)
        def _logits():
            # Linear(D -> 1) as VPU multiply + lane reduction.  An (S,D)x(D,1)
            # MXU matmul would use 1 of 256 output columns -> pure overhead.
            x32 = x_ref[...].astype(jnp.float32)
            w32 = w_ref[...].astype(jnp.float32)
            logits = jnp.sum(x32 * w32, axis=-1, keepdims=True)        # (TS, 1)
            logits = logits + b_ref[0, 0].astype(jnp.float32)
            logit_ref[pl.ds(start, TS), :] = logits

        # ---- pass 1, first tile: softmax over the whole sequence ----------
        @pl.when(jnp.logical_and(p == 1, i == 0))
        def _softmax():
            l = logit_ref[...]                                          # (S_pad, 1)
            if S_pad != S:  # static: mask rows introduced by sequence padding
                row = jax.lax.broadcasted_iota(jnp.int32, (S_pad, 1), 0)
                l = jnp.where(row < S, l, -jnp.inf)
            m = jnp.max(l, axis=0, keepdims=True)                       # (1, 1)
            e = jnp.exp(l - m)                                          # padded rows -> 0
            denom = jnp.sum(e, axis=0, keepdims=True)                   # (1, 1)
            # EUP approximate reciprocal + one Newton step: no full-precision
            # divide, yet f32-accurate (this is one scalar per kernel call).
            inv = pl.reciprocal(denom, approx=True)
            inv = inv * (2.0 - denom * inv)
            logit_ref[...] = e * inv                                    # attn weights

        # ---- pass 1: scale this tile by its attention weights -------------
        @pl.when(p == 1)
        def _scale():
            attn = logit_ref[pl.ds(start, TS), :]                       # (TS, 1) f32
            # Multiply in the input dtype: no full-tile f32 upcast for bf16 x.
            o_ref[...] = x_ref[...] * attn.astype(o_ref.dtype)

    return kernel


def _choose_tile(S, D, itemsize, max_rows, target_tile_bytes=2 * 1024 * 1024):
    """Largest sequence tile that keeps pipelined buffers far below the scoped
    VMEM default on all generations (v7x has only 64 MiB physical VMEM)."""
    rows = max(8, target_tile_bytes // max(1, D * itemsize))
    rows = min(max_rows, rows)
    rows = max(8, (rows // 8) * 8)            # sublane-aligned tile height
    if S <= rows:
        return S, 1, S                        # single full-extent block
    n = -(-S // rows)                         # cdiv
    return rows, n, n * rows


def attention3(x, w, b, *, max_rows_per_tile=2048):
    """Pallas-TPU Attention3 forward.

    x: (S, D); w: nn.Linear(D, 1) weight of shape (1, D); b: bias of shape (1,).
    Returns x * softmax(x @ w.T + b over S), shape (S, D).
    """
    S, D = x.shape
    w = jnp.asarray(w).reshape(1, D)
    b = jnp.asarray(b, dtype=jnp.float32).reshape(1, 1)

    TS, num_tiles, S_pad = _choose_tile(S, D, x.dtype.itemsize, max_rows_per_tile)
    x_in = x if S_pad == S else jnp.pad(x, ((0, S_pad - S), (0, 0)))

    # x is re-read in both passes; with near-zero compute per tile, go 3 buffers
    # deep on its pipeline when there are enough tiles so DMA latency stays hidden.
    if num_tiles >= 3:
        x_spec = pl.BlockSpec((TS, D), lambda p, i: (i, 0),
                              pipeline_mode=pl.Buffered(3))
    else:
        x_spec = pl.BlockSpec((TS, D), lambda p, i: (i, 0))

    out = pl.pallas_call(
        _make_attention3_kernel(S, S_pad, TS),
        out_shape=jax.ShapeDtypeStruct((S_pad, D), x.dtype),
        grid=(2, num_tiles),
        in_specs=[
            x_spec,
            pl.BlockSpec((1, D), lambda p, i: (0, 0)),      # weight: resident in VMEM
            pl.BlockSpec(memory_space=pltpu.SMEM),          # bias: scalar path
        ],
        # During pass 0 the output block index is pinned to 0 (never written, no
        # HBM writeback churn); during pass 1 it follows the tile index.
        out_specs=pl.BlockSpec((TS, D), lambda p, i: (i * p, 0)),
        scratch_shapes=[pltpu.VMEM((S_pad, 1), jnp.float32)],
        compiler_params=pltpu.CompilerParams(
            # The softmax is a global reduction over S -> both axes sequential.
            # (With a batch of sequences, add a leading "parallel" batch axis so
            #  megacore / v7x's second TensorCore gets used.)
            dimension_semantics=("arbitrary", "arbitrary"),
        ),
    )(x_in, w, b)

    return out if S_pad == S else out[:S]


def attention3_ref(x, w, b):
    logits = x @ jnp.asarray(w).reshape(-1, 1) + jnp.asarray(b).reshape(1, 1)
    attn = jax.nn.softmax(logits[:, 0], axis=-1).reshape(-1, 1)
    return x * attn


if __name__ == "__main__":
    key = jax.random.PRNGKey(0)
    kx, kw, kb, kx2, kw2, kb2 = jax.random.split(key, 6)

    # Shapes implied by the module: x is (sequence_length, dimention).
    SEQ_LEN, DIM = 8, 32
    x = jax.random.normal(kx, (SEQ_LEN, DIM), dtype=jnp.float32)
    w = jax.random.normal(kw, (1, DIM), dtype=jnp.float32) * 0.1   # nn.Linear(DIM,1).weight
    b = jax.random.normal(kb, (1,), dtype=jnp.float32) * 0.1       # nn.Linear(DIM,1).bias

    out = jax.block_until_ready(attention3(x, w, b))
    ref = attention3_ref(x, w, b)
    assert out.shape == (SEQ_LEN, DIM)
    assert jnp.allclose(out, ref, rtol=1e-4, atol=1e-5), "mismatch vs reference (small)"

    # Also exercise the general tiled path: multi-tile grid, sequence padding +
    # masking, and the 3-deep input pipeline.
    S2, D2 = 200, 128
    x2 = jax.random.normal(kx2, (S2, D2), dtype=jnp.float32)
    w2 = jax.random.normal(kw2, (1, D2), dtype=jnp.float32) * 0.05
    b2 = jax.random.normal(kb2, (1,), dtype=jnp.float32) * 0.05
    out2 = jax.block_until_ready(attention3(x2, w2, b2, max_rows_per_tile=64))
    ref2 = attention3_ref(x2, w2, b2)
    assert out2.shape == (S2, D2)
    assert jnp.allclose(out2, ref2, rtol=1e-4, atol=1e-5), "mismatch vs reference (tiled)"

    print("KERNEL_OK")
</pallas_src>

<mosaic_0001>
module attributes {stable_mosaic.version = 11 : i64} {
  func.func @kernel(%arg0: i32, %arg1: i32, %arg2: memref<8x32xf32, #tpu.memory_space<vmem>>, %arg3: memref<1x32xf32, #tpu.memory_space<vmem>>, %arg4: memref<1x1xf32, #tpu.memory_space<smem>>, %arg5: memref<8x32xf32, #tpu.memory_space<vmem>>, %arg6: memref<8x1xf32, #tpu.memory_space<vmem>>) attributes {dimension_semantics = [#tpu.dimension_semantics<arbitrary>, #tpu.dimension_semantics<arbitrary>], iteration_bounds = array<i64: 2, 1>, scalar_prefetch = 0 : i64, scratch_operands = 1 : i64, tpu.core_type = #tpu.core_type<tc>, window_params = [{transform_indices = @transform_0, window_bounds = array<i64: 8, 32>}, {pipeline_mode = #tpu.pipeline_mode<synchronous>, transform_indices = @transform_1, window_bounds = array<i64: 1, 32>}, {transform_indices = @transform_2, window_bounds = array<i64: 1, 1>}, {transform_indices = @transform_3, window_bounds = array<i64: 8, 32>}]} {
    %c8_i32 = arith.constant 8 : i32
    %0 = arith.muli %arg1, %c8_i32 : i32
    %1 = tpu.assume_multiple %0, 8 : i32
    %c0_i32 = arith.constant 0 : i32
    %2 = arith.cmpi eq, %arg0, %c0_i32 : i32
    %3 = arith.extui %2 : i1 to i32
    %c0_i32_0 = arith.constant 0 : i32
    %4 = arith.cmpi ne, %3, %c0_i32_0 : i32
    scf.if %4 {
      %c0 = arith.constant 0 : index
      %c0_5 = arith.constant 0 : index
      %13 = vector.load %arg2[%c0, %c0_5] : memref<8x32xf32, #tpu.memory_space<vmem>>, vector<8x32xf32>
      %c0_6 = arith.constant 0 : index
      %c0_7 = arith.constant 0 : index
      %14 = vector.load %arg3[%c0_6, %c0_7] : memref<1x32xf32, #tpu.memory_space<vmem>>, vector<1x32xf32>
      %15 = vector.broadcast %14 : vector<1x32xf32> to vector<8x32xf32>
      %16 = arith.mulf %13, %15 : vector<8x32xf32>
      %cst = arith.constant dense<0.000000e+00> : vector<8xf32>
      %17 = vector.multi_reduction <add>, %16, %cst [1] : vector<8x32xf32> to vector<8xf32>
      %18 = vector.shape_cast %17 : vector<8xf32> to vector<8x1xf32>
      %c0_8 = arith.constant 0 : index
      %c0_9 = arith.constant 0 : index
      %19 = memref.load %arg4[%c0_8, %c0_9] : memref<1x1xf32, #tpu.memory_space<smem>>
      %20 = vector.broadcast %19 : f32 to vector<8x1xf32>
      %21 = arith.addf %18, %20 : vector<8x1xf32>
      %22 = arith.index_cast %1 : i32 to index
      %c0_10 = arith.constant 0 : index
      %23 = vector.load %arg6[%22, %c0_10] : memref<8x1xf32, #tpu.memory_space<vmem>>, vector<8x1xf32>
      tpu.vector_store %arg6[%22, %c0_10], %21 {strides = array<i32>} : memref<8x1xf32, #tpu.memory_space<vmem>>, vector<8x1xf32>,
    } else {
    }
    %c1_i32 = arith.constant 1 : i32
    %5 = arith.cmpi eq, %arg0, %c1_i32 : i32
    %c0_i32_1 = arith.constant 0 : i32
    %6 = arith.cmpi eq, %arg1, %c0_i32_1 : i32
    %7 = arith.andi %5, %6 : i1
    %8 = arith.extui %7 : i1 to i32
    %c0_i32_2 = arith.constant 0 : i32
    %9 = arith.cmpi ne, %8, %c0_i32_2 : i32
    scf.if %9 {
      %c0 = arith.constant 0 : index
      %c0_5 = arith.constant 0 : index
      %13 = vector.load %arg6[%c0, %c0_5] : memref<8x1xf32, #tpu.memory_space<vmem>>, vector<8x1xf32>
      %cst = arith.constant dense<0xFF800000> : vector<1xf32>
      %14 = vector.multi_reduction <maximumf>, %13, %cst [0] : vector<8x1xf32> to vector<1xf32>
      %15 = vector.shape_cast %14 : vector<1xf32> to vector<1x1xf32>
      %16 = vector.broadcast %15 : vector<1x1xf32> to vector<8x1xf32>
      %17 = arith.subf %13, %16 : vector<8x1xf32>
      %18 = math.exp %17 : vector<8x1xf32>
      %cst_6 = arith.constant dense<0.000000e+00> : vector<1xf32>
      %19 = vector.multi_reduction <add>, %18, %cst_6 [0] : vector<8x1xf32> to vector<1xf32>
      %20 = vector.shape_cast %19 : vector<1xf32> to vector<1x1xf32>
      %21 = tpu.reciprocal %20 {approx = true} : vector<1x1xf32> -> vector<1x1xf32>
      %22 = arith.mulf %20, %21 : vector<1x1xf32>
      %cst_7 = arith.constant 2.000000e+00 : f32
      %23 = vector.broadcast %cst_7 : f32 to vector<1x1xf32>
      %24 = arith.subf %23, %22 : vector<1x1xf32>
      %25 = arith.mulf %21, %24 : vector<1x1xf32>
      %26 = vector.broadcast %25 : vector<1x1xf32> to vector<8x1xf32>
      %27 = arith.mulf %18, %26 : vector<8x1xf32>
      %c0_8 = arith.constant 0 : index
      %c0_9 = arith.constant 0 : index
      %28 = vector.load %arg6[%c0_8, %c0_9] : memref<8x1xf32, #tpu.memory_space<vmem>>, vector<8x1xf32>
      tpu.vector_store %arg6[%c0_8, %c0_9], %27 {strides = array<i32>} : memref<8x1xf32, #tpu.memory_space<vmem>>, vector<8x1xf32>,
    } else {
    }
    %c1_i32_3 = arith.constant 1 : i32
    %10 = arith.cmpi eq, %arg0, %c1_i32_3 : i32
    %11 = arith.extui %10 : i1 to i32
    %c0_i32_4 = arith.constant 0 : i32
    %12 = arith.cmpi ne, %11, %c0_i32_4 : i32
    scf.if %12 {
      %13 = arith.index_cast %1 : i32 to index
      %c0 = arith.constant 0 : index
      %14 = vector.load %arg6[%13, %c0] : memref<8x1xf32, #tpu.memory_space<vmem>>, vector<8x1xf32>
      %c0_5 = arith.constant 0 : index
      %c0_6 = arith.constant 0 : index
      %15 = vector.load %arg2[%c0_5, %c0_6] : memref<8x32xf32, #tpu.memory_space<vmem>>, vector<8x32xf32>
      %16 = vector.broadcast %14 : vector<8x1xf32> to vector<8x32xf32>
      %17 = arith.mulf %15, %16 : vector<8x32xf32>
      %c0_7 = arith.constant 0 : index
      %c0_8 = arith.constant 0 : index
      %18 = vector.load %arg5[%c0_7, %c0_8] : memref<8x32xf32, #tpu.memory_space<vmem>>, vector<8x32xf32>
      tpu.vector_store %arg5[%c0_7, %c0_8], %17 {strides = array<i32>} : memref<8x32xf32, #tpu.memory_space<vmem>>, vector<8x32xf32>,
    } else {
    }
    return
  }
  func.func @transform_0(%arg0: i32, %arg1: i32) -> (i32, i32) {
    %c0_i32 = arith.constant 0 : i32
    %c0_i32_0 = arith.constant 0 : i32
    return %arg1, %c0_i32 : i32, i32
  }
  func.func @transform_1(%arg0: i32, %arg1: i32) -> (i32, i32) {
    %c0_i32 = arith.constant 0 : i32
    %c0_i32_0 = arith.constant 0 : i32
    %c0_i32_1 = arith.constant 0 : i32
    return %c0_i32, %c0_i32_0 : i32, i32
  }
  func.func @transform_2(%arg0: i32, %arg1: i32) -> (i32, i32) {
    %c0_i32 = arith.constant 0 : i32
    %c0_i32_0 = arith.constant 0 : i32
    %c0_i32_1 = arith.constant 0 : i32
    return %c0_i32, %c0_i32_0 : i32, i32
  }
  func.func @transform_3(%arg0: i32, %arg1: i32) -> (i32, i32) {
    %0 = arith.muli %arg1, %arg0 : i32
    %c0_i32 = arith.constant 0 : i32
    %c0_i32_0 = arith.constant 0 : i32
    return %0, %c0_i32 : i32, i32
  }
}

</mosaic_0001>

<llo_original>
// kernel: tpu_custom_call.1
$region0: #{tpu_custom_call.1}
  #allocation0 [shape = 'u32[]', space=smem, size = 0x4, offset = 0x4, fixed_abs, tag = 'smem constant byte address 0x4 - core index']
  #allocation1 [shape = 'u32[72,128]{1,0:T(1,128)}', space=vmem, size = 0x9000, scoped, tag = 'internal scratch']
  #allocation2 [shape = 'f32[8,1]{1,0:T(8,128)}', space=vmem, size = 0x1000, scoped, tag = 'scratch operand']
  #allocation3 [shape = 'f32[1,1]{1,0:T(1,128)S(6)}', space=smem, size = 0x200, scoped, tag = 'scoped memory for tpu_custom_call.1']
  %s0 = inlined_call_operand.hbm [shape: f32[8,32], index: 0, kind: input, shape index: {}]
  %s1 = inlined_call_operand.vmem [shape: f32[1,32], index: 1, kind: input, shape index: {}]
  %s2 = inlined_call_operand.<no memory space> [shape: f32[1,1], index: 2, kind: input, shape index: {}]
  %s3 = inlined_call_operand.hbm [shape: f32[8,32], index: 3, kind: output, shape index: {}]
  %s4 = sld [smem:[#allocation0]]
  $region61: #{tpu_custom_call.1} parent=0
    _
  %s6 = ssub.s32 1, %s4
  %s7 = scalar_select 0, %s6, %s4
  %8 = sst [smem:[#allocation3]] %s2
  $region1: #{tpu_custom_call.1} parent=0
    #allocation4 [shape = 'u8[4096]{0}', space=vmem, size = 0x1000, scoped, tag = 'input window, operand 0, single buffered']
    #allocation5 [shape = 's32[2]{0}', space=sflag, size = 0x8, scoped, tag = 'scoped memory for tpu_custom_call.1']
    #allocation6 [shape = 's32[2]{0}', space=sflag, size = 0x8, scoped, tag = 'scoped memory for tpu_custom_call.1']
    #allocation7 [shape = 'u8[8192]{0}', space=vmem, size = 0x2000, scoped, tag = 'output window, operand 0']
    %9 = vsyncpa [#allocation5], 0
    %10 = vsyncpa [#allocation6], 0
    %s11 = scalar_lea.sflag [#allocation6], 1
    %12 = vsyncpa %s11, 0
    loop: start=0, step=1, limit=4
    $region2: #{tpu_custom_call.1} parent=1 // loop_pre_header
      _
    $region3: #{tpu_custom_call.1} parent=1 // loop_header
      %s14 = sphi 0, %s18
      %p15 = scmp.ge.s32.totalorder %s14, 4
      %s21 = sphi 0, %s33
      %s22 = sphi 0, %s29
      %s23 = sphi 0, %s21
      %s24 = sphi 0, %s22
      %s25 = sphi 0, %s23
      %s26 = sphi 0, %s24
      %s36 = sphi 0, %s38
      %s39 = sphi 0, %s36
      %s40 = sphi 0, %s39
      %s56 = sphi 0, %s40
      %s60 = sphi 0, %s60
      %s62 = sphi 0, %s60
      %s63 = sphi 0, %s62
      %s77 = sphi 0, %s63
      %s81 = sphi 0, %s81
      %s83 = sphi 0, %s81
      %s84 = sphi 0, %s83
      %s98 = sphi 0, %s84
      %s106 = sphi 0, %s108
      %s109 = sphi 0, %s106
      %s110 = sphi 0, %s109
      %s126 = sphi 0, %s110
    $region4: #{tpu_custom_call.1} parent=1 // loop_header_branch
      %17 = sbr.rel (%p15) target = $region8
    $region5: #{tpu_custom_call.1} parent=1 // loop_body
      %s19 = ssub.s32 %s14, 1
      %s20 = ssub.s32 %s14, 2
      %s27 = sadd.s32 1, %s22
      %p28 = scmp.ge.s32.totalorder %s27, 1
      %s29 = scalar_select %p28, 0, %s27
      %s30 = sadd.s32 1, %s21
      %s31 = scalar_select %p28, %s30, %s21
      %p32 = scmp.ge.s32.totalorder %s31, 2
      %s33 = scalar_select %p32, 0, %s31
      %s34 = ssub.s32 %s22, %s29
      %p35 = scmp.eq.s32.totalorder %s34, 0
      %s37 = sadd.s32 %s36, 1
      %s38 = scalar_select %p35, %s36, %s37
      %p41 = pneg %p35
      %p42 = scmp.eq.s32.totalorder %s14, 1
      %p43 = por %p41, %p42
      %p44 = scmp.ne.s32.totalorder %s36, %s39
      %p45 = scmp.eq.s32.totalorder %s14, 0
      %p46 = por %p44, %p45
      %p47 = scmp.ne.s32.totalorder %s36, %s39
      %p48 = scmp.eq.s32.totalorder %s19, 1
      %p49 = por %p47, %p48
      %p50 = scmp.ne.s32.totalorder %s39, %s40
      %p51 = scmp.eq.s32.totalorder %s19, 0
      %p52 = por %p50, %p51
      %p53 = scmp.ne.s32.totalorder %s39, %s40
      %p54 = scmp.eq.s32.totalorder %s20, 1
      %p55 = por %p53, %p54
      %p57 = scmp.ne.s32.totalorder %s40, %s56
      %p58 = scmp.eq.s32.totalorder %s20, 0
      %p59 = por %p57, %p58
      %s61 = sadd.s32 %s60, 1
      %p64 = scmp.eq.s32.totalorder %s14, 1
      %p65 = scmp.ne.s32.totalorder %s60, %s62
      %p66 = scmp.eq.s32.totalorder %s14, 0
      %p67 = por %p65, %p66
      %p68 = scmp.ne.s32.totalorder %s60, %s62
      %p69 = scmp.eq.s32.totalorder %s19, 1
      %p70 = por %p68, %p69
      %p71 = scmp.ne.s32.totalorder %s62, %s63
      %p72 = scmp.eq.s32.totalorder %s19, 0
      %p73 = por %p71, %p72
      %p74 = scmp.ne.s32.totalorder %s62, %s63
      %p75 = scmp.eq.s32.totalorder %s20, 1
      %p76 = por %p74, %p75
      %p78 = scmp.ne.s32.totalorder %s63, %s77
      %p79 = scmp.eq.s32.totalorder %s20, 0
      %p80 = por %p78, %p79
      %s82 = sadd.s32 %s81, 1
      %p85 = scmp.eq.s32.totalorder %s14, 1
      %p86 = scmp.ne.s32.totalorder %s81, %s83
      %p87 = scmp.eq.s32.totalorder %s14, 0
      %p88 = por %p86, %p87
      %p89 = scmp.ne.s32.totalorder %s81, %s83
      %p90 = scmp.eq.s32.totalorder %s19, 1
      %p91 = por %p89, %p90
      %p92 = scmp.ne.s32.totalorder %s83, %s84
      %p93 = scmp.eq.s32.totalorder %s19, 0
      %p94 = por %p92, %p93
      %p95 = scmp.ne.s32.totalorder %s83, %s84
      %p96 = scmp.eq.s32.totalorder %s20, 1
      %p97 = por %p95, %p96
      %p99 = scmp.ne.s32.totalorder %s84, %s98
      %p100 = scmp.eq.s32.totalorder %s20, 0
      %p101 = por %p99, %p100
      %s102 = smul.u32 %s22, %s21
      %s103 = smul.u32 %s29, %s33
      %s104 = ssub.s32 %s102, %s103
      %p105 = scmp.eq.s32.totalorder %s104, 0
      %s107 = sadd.s32 %s106, 1
      %s108 = scalar_select %p105, %s106, %s107
      %p111 = pneg %p105
      %p112 = scmp.eq.s32.totalorder %s14, 1
      %p113 = por %p111, %p112
      %p114 = scmp.ne.s32.totalorder %s106, %s109
      %p115 = scmp.eq.s32.totalorder %s14, 0
      %p116 = por %p114, %p115
      %p117 = scmp.ne.s32.totalorder %s106, %s109
      %p118 = scmp.eq.s32.totalorder %s19, 1
      %p119 = por %p117, %p118
      %p120 = scmp.ne.s32.totalorder %s109, %s110
      %p121 = scmp.eq.s32.totalorder %s19, 0
      %p122 = por %p120, %p121
      %p123 = scmp.ne.s32.totalorder %s109, %s110
      %p124 = scmp.eq.s32.totalorder %s20, 1
      %p125 = por %p123, %p124
      %p127 = scmp.ne.s32.totalorder %s110, %s126
      %p128 = scmp.eq.s32.totalorder %s20, 0
      %p129 = por %p127, %p128
      %p130 = scmp.le.s32.totalorder 1, %s14
      %p131 = scmp.lt.s32.totalorder %s14, 3
      %p132 = pnand %p130, %p131
      %p133 = pneg %p132
      // Predicated region
      $region9: #{tpu_custom_call.1} parent=5 // pred_check
        _
      $region10: #{tpu_custom_call.1} parent=5 // pred_check_branch
        %135 = sbr.rel (%p132) target = $region12
      $region11: #{tpu_custom_call.1} parent=5 // pred_region
        %s136 = ssub.s32 %s14, 1
        // Predicated region
        $region13: #{tpu_custom_call.1} parent=11 // pred_check
          %p137 = pneg %p52
        $region14: #{tpu_custom_call.1} parent=11 // pred_check_branch
          %139 = sbr.rel (%p137) target = $region16
        $region15: #{tpu_custom_call.1} parent=11 // pred_region
          %141 = vsyncadd [#allocation5], 0
          %s142 = smul.addr %s24, 8
          %s143 = scalar_lea.hbm %s0, %s142
          %s145 = sshll.u32 %s143, 4
          %s146 = int_to_ptr.hbm [resolvable:$true] %s145
          %s147 = sshll.u32 [#allocation4], 4
          %s148 = int_to_ptr.vmem [resolvable:$true] %s147
          %150 = dma.hbm_to_vmem [thread:$0]  %s146, 128, %s148, [#allocation5]
        $region16: #{tpu_custom_call.1} parent=11 // pred_fallthru
          _
        // Predicated region
        $region17: #{tpu_custom_call.1} parent=11 // pred_check
          %p151 = pneg %p73
        $region18: #{tpu_custom_call.1} parent=11 // pred_check_branch
          %153 = sbr.rel (%p151) target = $region20
        $region19: #{tpu_custom_call.1} parent=11 // pred_region
          _
        $region20: #{tpu_custom_call.1} parent=11 // pred_fallthru
          _
        // Predicated region
        $region21: #{tpu_custom_call.1} parent=11 // pred_check
          %p154 = pneg %p94
        $region22: #{tpu_custom_call.1} parent=11 // pred_check_branch
          %156 = sbr.rel (%p154) target = $region24
        $region23: #{tpu_custom_call.1} parent=11 // pred_region
          _
        $region24: #{tpu_custom_call.1} parent=11 // pred_fallthru
          _
      $region12: #{tpu_custom_call.1} parent=5 // pred_fallthru
        _
      %p157 = scmp.lt.s32.totalorder %s14, 2
      // Predicated region
      $region25: #{tpu_custom_call.1} parent=5 // pred_check
        %p158 = pneg %p157
      $region26: #{tpu_custom_call.1} parent=5 // pred_check_branch
        %160 = sbr.rel (%p158) target = $region28
      $region27: #{tpu_custom_call.1} parent=5 // pred_region
        _
      $region28: #{tpu_custom_call.1} parent=5 // pred_fallthru
        _
      %p161 = scmp.le.s32.totalorder 1, %s14
      %p162 = scmp.lt.s32.totalorder %s14, 3
      %p163 = pnand %p161, %p162
      %p164 = pneg %p163
      // Predicated region
      $region29: #{tpu_custom_call.1} parent=5 // pred_check
        _
      $region30: #{tpu_custom_call.1} parent=5 // pred_check_branch
        %166 = sbr.rel (%p163) target = $region32
      $region31: #{tpu_custom_call.1} parent=5 // pred_region
        %s167 = ssub.s32 %s14, 1
        // Predicated region
        $region33: #{tpu_custom_call.1} parent=31 // pred_check
          %p168 = pneg %p52
        $region34: #{tpu_custom_call.1} parent=31 // pred_check_branch
          %170 = sbr.rel (%p168) target = $region36
        $region35: #{tpu_custom_call.1} parent=31 // pred_region
          %172 = dma.done [#allocation5], 128
        $region36: #{tpu_custom_call.1} parent=31 // pred_fallthru
          _
        %p173 = pneg %p52
        %p174 = pneg %p49
        %p175 = pneg %p73
        %p176 = pneg %p70
        %p177 = pneg %p94
        %p178 = pneg %p91
        %p179 = pneg %p122
        %p180 = pneg %p119
        %s181 = sand.u32 %s109, 1
        %s182 = scalar_lea.sflag [#allocation6], %s181
        %s183 = sand.u32 %s109, 1
        %s184 = smul.addr %s183, 8
        %s185 = scalar_lea.vmem [#allocation7], %s184
        %s186 = smul.u32 %s24, %s23
        %s187 = smul.u32 %s24, 8
        %p188 = scmp.eq.s32.totalorder %s23, 0
        // Predicated region
        $region37: #{tpu_custom_call.1} parent=31 // pred_check
          %p189 = pneg %p188
        $region38: #{tpu_custom_call.1} parent=31 // pred_check_branch
          %191 = sbr.rel (%p189) target = $region40
        $region39: #{tpu_custom_call.1} parent=31 // pred_region
          %v192 = vld [vmem:[#allocation4] sm:$0xff]
          %v193 = vld [vmem:[%s1] sm:$0x1]
          %v195 = vperm.slane %v193, 0
          %v197 = vmul.f32 %v192, %v195
          %vm198 = vcmask 261120
          %v199 = vsel %vm198, %v197, 0.0
          %200 = vadd.xlane.f32.xlu0 %v199
          %v201 = vpop.xlane.xlu0 %200
          %s202 = sld [smem:[#allocation3]]
          %v203 = vstv %s202
          %v204 = vadd.f32 %v201, %v203
          %s205 = scalar_lea.vmem [#allocation2], %s187
          %vm206 = vcmask 7168
          %207 = vst.msk [vmem:[%s205] sm:$0xff] %vm206, %v204
        $region40: #{tpu_custom_call.1} parent=31 // pred_fallthru
          _
        %p208 = scmp.eq.s32.totalorder %s23, 1
        %p209 = scmp.eq.s32.totalorder %s24, 0
        %p210 = pnand %p208, %p209
        %p211 = pneg %p210
        // Predicated region
        $region41: #{tpu_custom_call.1} parent=31 // pred_check
          _
        $region42: #{tpu_custom_call.1} parent=31 // pred_check_branch
          %213 = sbr.rel (%p210) target = $region44
        $region43: #{tpu_custom_call.1} parent=31 // pred_region
          %v214 = vld [vmem:[#allocation2] sm:$0xff]
          %vm215 = vcmask 7168
          %v216 = vsel %vm215, %v214, -inf
          %v217 = vrot.slane %v216, 4
          %v218 = vmax.f32 %v216, %v217
          %v219 = vrot.slane %v218, 2
          %v220 = vmax.f32 %v218, %v219
          %v221 = vrot.slane %v220, 1
          %v222 = vmax.f32 %v220, %v221
          %v223 = vsub.f32 %v214, %v222
          %v224 = vmul.f32 %v223, 1.442695
          %v225 = vpow.pop %v224
          %v226 = vsel %vm215, %v225, 0.0
          %v227 = vrot.slane %v226, 4
          %v228 = vadd.f32 %v226, %v227
          %v229 = vrot.slane %v228, 2
          %v230 = vadd.f32 %v228, %v229
          %v231 = vrot.slane %v230, 1
          %v232 = vadd.f32 %v230, %v231
          %v233 = vrcp.pop %v232
          %v234 = vmul.f32 %v232, %v233
          %v235 = vsub.f32 2.0, %v234
          %v236 = vmul.f32 %v233, %v235
          %v237 = vmul.f32 %v225, %v236
          %238 = vst.msk [vmem:[#allocation2] sm:$0xff] %vm215, %v237
        $region44: #{tpu_custom_call.1} parent=31 // pred_fallthru
          _
        // Predicated region
        $region45: #{tpu_custom_call.1} parent=31 // pred_check
          %p239 = pneg %p208
        $region46: #{tpu_custom_call.1} parent=31 // pred_check_branch
          %241 = sbr.rel (%p239) target = $region48
        $region47: #{tpu_custom_call.1} parent=31 // pred_region
          %s242 = scalar_lea.vmem [#allocation2], %s187
          %v243 = vld [vmem:[%s242] sm:$0xff]
          %v244 = vld [vmem:[#allocation4] sm:$0xff]
          %246 = vset.pattern.permute.xlu0 0
          %247 = vperm.xlu0 %246, %v243
          %v248 = vpop.permute.xlu0 %247
          %v250 = vmul.f32 %v244, %v248
          %vm251 = vcmask 261120
          %252 = vst.msk [vmem:[%s185] sm:$0xff] %vm251, %v250
        $region48: #{tpu_custom_call.1} parent=31 // pred_fallthru
          _
        %s253 = sand.u32 %s109, 1
        %s254 = scalar_lea.sflag [#allocation6], %s253
        %s255 = sand.u32 %s109, 1
        %s256 = smul.addr %s255, 8
        %s257 = scalar_lea.vmem [#allocation7], %s256
        // Predicated region
        $region49: #{tpu_custom_call.1} parent=31 // pred_check
          %p258 = pneg %p119
        $region50: #{tpu_custom_call.1} parent=31 // pred_check_branch
          %260 = sbr.rel (%p258) target = $region52
        $region51: #{tpu_custom_call.1} parent=31 // pred_region
          %s261 = smul.u32 %s24, %s23
          %263 = vsyncadd %s254, 0
          %s264 = smul.addr %s261, 8
          %s265 = scalar_lea.hbm %s3, %s264
          %s267 = sshll.u32 %s257, 4
          %s268 = int_to_ptr.vmem [resolvable:$true] %s267
          %s269 = sshll.u32 %s265, 4
          %s270 = int_to_ptr.hbm [resolvable:$true] %s269
          %272 = dma.vmem_to_hbm [thread:$0]  %s268, 128, %s270, %s254
        $region52: #{tpu_custom_call.1} parent=31 // pred_fallthru
          _
      $region32: #{tpu_custom_call.1} parent=5 // pred_fallthru
        _
      %p273 = scmp.le.s32.totalorder 2, %s14
      // Predicated region
      $region53: #{tpu_custom_call.1} parent=5 // pred_check
        %p274 = pneg %p273
      $region54: #{tpu_custom_call.1} parent=5 // pred_check_branch
        %276 = sbr.rel (%p274) target = $region56
      $region55: #{tpu_custom_call.1} parent=5 // pred_region
        %s277 = ssub.s32 %s14, 2
        // Predicated region
        $region57: #{tpu_custom_call.1} parent=55 // pred_check
          %p278 = pneg %p125
        $region58: #{tpu_custom_call.1} parent=55 // pred_check_branch
          %280 = sbr.rel (%p278) target = $region60
        $region59: #{tpu_custom_call.1} parent=55 // pred_region
          %s281 = sand.u32 %s110, 1
          %s282 = scalar_lea.sflag [#allocation6], %s281
          %s283 = sand.u32 %s110, 1
          %s284 = smul.addr %s283, 8
          %s285 = scalar_lea.vmem [#allocation7], %s284
          %287 = dma.done %s282, 128
        $region60: #{tpu_custom_call.1} parent=55 // pred_fallthru
          _
      $region56: #{tpu_custom_call.1} parent=5 // pred_fallthru
        _
    $region6: #{tpu_custom_call.1} parent=1 // loop_footer
      %s18 = sadd.s32 1, %s14
    $region7: #{tpu_custom_call.1} parent=1 // loop_footer_branch
      %13 = sbr.rel target = $region3
    $region8: #{tpu_custom_call.1} parent=1 // loop_exit
      _
    %288 = vsyncpa [#allocation5], 1
    %s289 = scalar_lea.sflag [#allocation5], 1
    %290 = vsyncpa %s289, 1
    %291 = vsyncpa [#allocation6], 1
    %s292 = scalar_lea.sflag [#allocation6], 1
    %293 = vsyncpa %s292, 1

</llo_original>
